<compile_context>
chip_gen: v6e
topology: v6e:2x2x1
jax: 0.10.0
libtpu: 0.0.40
codegen_flags: <defaults>
</compile_context>

<pallas_src>
from functools import partial

import jax
import jax.numpy as jnp
from jax.experimental import pallas as pl
from jax.experimental.pallas import tpu as pltpu


def _round_up(x, m):
    return ((x + m - 1) // m) * m


def _posenc_kernel(d_ref, tab_ref, o_ref, *, pack, d_model, half, width, exact_split):
    # d_ref:   (tile_pr, pack)   f32 -- `pack` logical rows per packed 128-lane row
    # tab_ref: (2, width)        f32 -- row0: inv_freq pattern, row1: phase (0 / pi/2)
    # o_ref:   (tile_pr, width)  f32 -- lane-dense packed output block
    tile_pr = d_ref.shape[0]
    d = d_ref[...]
    tab = tab_ref[...]

    if exact_split:
        # pack == 1, d_model % 256 == 0: bit-exact vs. reference, one trig per element,
        # both halves 128-lane aligned (no masked stores, no layout copies).
        arg = jnp.broadcast_to(d, (tile_pr, half)) * tab[0:1, :half]
        o_ref[:, :half] = jnp.sin(arg)
        o_ref[:, half:] = jnp.cos(arg)
    else:
        # Expand each packed distance across its d_model output lanes.
        if pack == 1:
            d_exp = jnp.broadcast_to(d, (tile_pr, width))
        else:
            d_exp = jnp.concatenate(
                [jnp.broadcast_to(d[:, p:p + 1], (tile_pr, d_model)) for p in range(pack)],
                axis=-1,
            )
        # Single trig per element: cos(x) computed as sin(x + pi/2) via the phase row.
        o_ref[...] = jnp.sin(d_exp * tab[0:1, :] + tab[1:2, :])


def transformer_positional_encoding(distance_bins, d_model, pos_emb_base_pow=10000,
                                    max_packed_rows=None):
    """Pallas equivalent of TransformerPositionalEncoding.forward.

    distance_bins: (batch, num_bins) array (any real dtype).
    returns: (batch, num_bins, d_model) float32.
    """
    assert d_model % 2 == 0, "d_model must be even (sin/cos halves)"
    batch, num_bins = distance_bins.shape
    half = d_model // 2
    rows = batch * num_bins

    # --- lane packing factor --------------------------------------------------
    if d_model % 128 == 0:
        pack, width = 1, d_model                 # already lane-dense
    elif 128 % d_model == 0:
        pack, width = 128 // d_model, 128        # pack logical rows per 128-lane row
    else:
        pack, width = 1, _round_up(d_model, 128)  # lane-padded; junk lanes sliced off
    # Bit-exact single-trig path needs 128-lane aligned halves.
    exact_split = (pack == 1) and (width == d_model) and (d_model % 256 == 0)

    # --- row tiling -------------------------------------------------------------
    # Per grid step (double buffered in + out); the (tile_pr, pack) input block is
    # lane-padded to 128 in VMEM, so it is ~as large as a width=128 output block.
    packed_rows = pl.cdiv(rows, pack)
    bytes_per_packed_row = 4 * (width + 128)
    vmem_budget = 16 * 1024 * 1024               # ~half of the 32 MiB scoped limit below
    cap = max(8, (vmem_budget // (2 * bytes_per_packed_row)) // 8 * 8)
    if max_packed_rows is not None:              # override (exercises multi-tile grids)
        cap = max(8, (max_packed_rows // 8) * 8)
    # >= 2 tiles when possible so ("parallel",) can use both v7x TensorCores.
    tile_pr = min(cap, max(8, _round_up(pl.cdiv(packed_rows, 2), 8)))
    packed_rows_pad = _round_up(packed_rows, tile_pr)
    rows_pad = packed_rows_pad * pack
    n_tiles = packed_rows_pad // tile_pr

    # --- (2, width) table: inv_freq pattern + phase row (exact reference formula) ---
    freq_seq = jnp.arange(0, d_model, 2.0, dtype=jnp.float32)
    inv_freq = 1.0 / jnp.power(jnp.float32(pos_emb_base_pow), freq_seq / d_model)
    inv_row = jnp.concatenate([inv_freq, inv_freq])                       # (d_model,)
    phase_row = jnp.concatenate([jnp.zeros((half,), jnp.float32),
                                 jnp.full((half,), jnp.pi / 2, jnp.float32)])
    if pack > 1:
        inv_row = jnp.tile(inv_row, (pack,))
        phase_row = jnp.tile(phase_row, (pack,))
    elif width > d_model:                                                 # lane-padded fallback
        inv_row = jnp.pad(inv_row, (0, width - d_model))
        phase_row = jnp.pad(phase_row, (0, width - d_model))
    tab = jnp.stack([inv_row, phase_row]).reshape(2, width)

    # --- packed, padded distances (zero padding -> harmless sin(0)/cos(0)) -------
    dists = distance_bins.reshape(-1).astype(jnp.float32)
    if rows_pad != rows:
        dists = jnp.pad(dists, (0, rows_pad - rows))
    dists2d = dists.reshape(packed_rows_pad, pack)

    kernel = partial(_posenc_kernel, pack=pack, d_model=d_model, half=half,
                     width=width, exact_split=exact_split)

    out = pl.pallas_call(
        kernel,
        out_shape=jax.ShapeDtypeStruct((packed_rows_pad, width), jnp.float32),
        grid_spec=pl.GridSpec(
            grid=(n_tiles,),
            in_specs=[
                pl.BlockSpec((tile_pr, pack), lambda i: (i, 0)),
                pl.BlockSpec((2, width), lambda i: (0, 0)),
            ],
            out_specs=pl.BlockSpec((tile_pr, width), lambda i: (i, 0)),
        ),
        compiler_params=pltpu.CompilerParams(
            dimension_semantics=("parallel",),        # shard row tiles across TCs (v7x)
            vmem_limit_bytes=32 * 1024 * 1024,
        ),
        cost_estimate=pl.CostEstimate(
            flops=2 * packed_rows_pad * width,
            transcendentals=packed_rows_pad * width,   # one trig per output element
            bytes_accessed=packed_rows_pad * width * 4 + rows_pad * 4 + 2 * width * 4,
        ),
    )(dists2d, tab)

    # Unpack back to the logical layout.
    if width == pack * d_model:
        # Free row-major reshape + cheap leading-row slice.
        result = out.reshape(packed_rows_pad * pack, d_model)[:rows]
    else:
        # Lane-padded fallback: drop the junk lanes (cheap slice in the wrapper).
        result = out[:rows, :d_model]
    return result.reshape(batch, num_bins, d_model)


def _reference(distance_bins, d_model, pos_emb_base_pow=10000):
    """Pure-JAX reference mirroring the PyTorch forward exactly."""
    freq_seq = jnp.arange(0, d_model, 2.0, dtype=jnp.float32)
    inv_freq = 1.0 / jnp.power(jnp.float32(pos_emb_base_pow), freq_seq / d_model)
    batch, num_bins = distance_bins.shape
    dists_flat = distance_bins.reshape(-1).astype(jnp.float32)
    sinusoid_inp = jnp.einsum("i,d->id", dists_flat, inv_freq)
    pos_emb = jnp.concatenate([jnp.sin(sinusoid_inp), jnp.cos(sinusoid_inp)], axis=-1)
    return pos_emb.reshape(batch, num_bins, d_model)


def _check(distance_bins, d_model, atol, **kw):
    out = jax.block_until_ready(transformer_positional_encoding(distance_bins, d_model, **kw))
    ref = _reference(distance_bins, d_model)
    assert out.shape == ref.shape, (out.shape, ref.shape)
    assert jnp.allclose(out, ref, atol=atol, rtol=1e-5), "mismatch vs reference"


if __name__ == "__main__":
    key = jax.random.PRNGKey(0)
    k1, k2, k3, k4 = jax.random.split(key, 4)

    # 1) Original small case (d_model=32 -> 4 rows packed per 128-lane row, phase-fold path).
    #    Phase fold adds <= ~ulp(arg)/2 abs error (~4e-6 for these distance magnitudes).
    db1 = jax.random.randint(k1, (2, 8), 0, 64).astype(jnp.float32)
    _check(db1, 32, atol=2e-5)

    # 2) Ragged row count + multi-tile grid (rows not a multiple of the tile).
    db2 = jax.random.randint(k2, (3, 37), 0, 64).astype(jnp.float32)
    _check(db2, 32, atol=2e-5, max_packed_rows=16)

    # 3) d_model multiple of 256: bit-exact half-split single-trig path, >=2 parallel tiles.
    db3 = jax.random.randint(k3, (2, 5), 0, 64).astype(jnp.float32)
    _check(db3, 256, atol=1e-5)

    # 4) d_model neither divides nor is a multiple of 128: lane-padded (still full-width stores).
    db4 = jax.random.randint(k4, (2, 9), 0, 64).astype(jnp.float32)
    _check(db4, 96, atol=2e-5)

    print("KERNEL_OK")
</pallas_src>

<mosaic_0001>
module attributes {stable_mosaic.version = 11 : i64} {
  func.func @_posenc_kernel(%arg0: i32, %arg1: memref<8x4xf32, #tpu.memory_space<vmem>>, %arg2: memref<2x128xf32, #tpu.memory_space<vmem>>, %arg3: memref<8x128xf32, #tpu.memory_space<vmem>>) attributes {dimension_semantics = [#tpu.dimension_semantics<parallel>], iteration_bounds = array<i64: 1>, scalar_prefetch = 0 : i64, scratch_operands = 0 : i64, tpu.core_type = #tpu.core_type<tc>, window_params = [{transform_indices = @transform_0, window_bounds = array<i64: 8, 4>}, {pipeline_mode = #tpu.pipeline_mode<synchronous>, transform_indices = @transform_1, window_bounds = array<i64: 2, 128>}, {transform_indices = @transform_2, window_bounds = array<i64: 8, 128>}]} {
    %c0 = arith.constant 0 : index
    %c0_0 = arith.constant 0 : index
    %0 = vector.load %arg1[%c0, %c0_0] : memref<8x4xf32, #tpu.memory_space<vmem>>, vector<8x4xf32>
    %c0_1 = arith.constant 0 : index
    %c0_2 = arith.constant 0 : index
    %1 = vector.load %arg2[%c0_1, %c0_2] : memref<2x128xf32, #tpu.memory_space<vmem>>, vector<2x128xf32>
    %2 = vector.extract_strided_slice %0 {offsets = [0, 0], sizes = [8, 1], strides = [1, 1]} : vector<8x4xf32> to vector<8x1xf32>
    %3 = vector.shape_cast %2 : vector<8x1xf32> to vector<8x1xf32>
    %4 = vector.broadcast %3 : vector<8x1xf32> to vector<8x32xf32>
    %5 = vector.extract_strided_slice %0 {offsets = [0, 1], sizes = [8, 1], strides = [1, 1]} : vector<8x4xf32> to vector<8x1xf32>
    %6 = vector.shape_cast %5 : vector<8x1xf32> to vector<8x1xf32>
    %7 = vector.broadcast %6 : vector<8x1xf32> to vector<8x32xf32>
    %8 = vector.extract_strided_slice %0 {offsets = [0, 2], sizes = [8, 1], strides = [1, 1]} : vector<8x4xf32> to vector<8x1xf32>
    %9 = vector.shape_cast %8 : vector<8x1xf32> to vector<8x1xf32>
    %10 = vector.broadcast %9 : vector<8x1xf32> to vector<8x32xf32>
    %11 = vector.extract_strided_slice %0 {offsets = [0, 3], sizes = [8, 1], strides = [1, 1]} : vector<8x4xf32> to vector<8x1xf32>
    %12 = vector.shape_cast %11 : vector<8x1xf32> to vector<8x1xf32>
    %13 = vector.broadcast %12 : vector<8x1xf32> to vector<8x32xf32>
    %14 = tpu.concatenate %4, %7, %10, %13 in 1 : vector<8x32xf32>, vector<8x32xf32>, vector<8x32xf32>, vector<8x32xf32> -> vector<8x128xf32>
    %15 = vector.extract_strided_slice %1 {offsets = [0, 0], sizes = [1, 128], strides = [1, 1]} : vector<2x128xf32> to vector<1x128xf32>
    %16 = vector.broadcast %15 : vector<1x128xf32> to vector<8x128xf32>
    %17 = arith.mulf %14, %16 : vector<8x128xf32>
    %18 = vector.extract_strided_slice %1 {offsets = [1, 0], sizes = [1, 128], strides = [1, 1]} : vector<2x128xf32> to vector<1x128xf32>
    %19 = vector.broadcast %18 : vector<1x128xf32> to vector<8x128xf32>
    %20 = arith.addf %17, %19 : vector<8x128xf32>
    %21 = math.sin %20 : vector<8x128xf32>
    %c0_3 = arith.constant 0 : index
    %c0_4 = arith.constant 0 : index
    %22 = vector.load %arg3[%c0_3, %c0_4] : memref<8x128xf32, #tpu.memory_space<vmem>>, vector<8x128xf32>
    tpu.vector_store %arg3[%c0_3, %c0_4], %21 {strides = array<i32>} : memref<8x128xf32, #tpu.memory_space<vmem>>, vector<8x128xf32>,
    return
  }
  func.func @transform_0(%arg0: i32) -> (i32, i32) {
    %c0_i32 = arith.constant 0 : i32
    %c0_i32_0 = arith.constant 0 : i32
    return %arg0, %c0_i32 : i32, i32
  }
  func.func @transform_1(%arg0: i32) -> (i32, i32) {
    %c0_i32 = arith.constant 0 : i32
    %c0_i32_0 = arith.constant 0 : i32
    %c0_i32_1 = arith.constant 0 : i32
    return %c0_i32, %c0_i32_0 : i32, i32
  }
  func.func @transform_2(%arg0: i32) -> (i32, i32) {
    %c0_i32 = arith.constant 0 : i32
    %c0_i32_0 = arith.constant 0 : i32
    return %arg0, %c0_i32 : i32, i32
  }
}

</mosaic_0001>

<llo_original>
// kernel: tpu_custom_call.1
$region0: #{tpu_custom_call.1}
  #allocation0 [shape = 'u32[]', space=smem, size = 0x4, offset = 0x4, fixed_abs, tag = 'smem constant byte address 0x4 - core index']
  #allocation1 [shape = 'u32[144,128]{1,0:T(1,128)}', space=vmem, size = 0x12000, scoped, tag = 'internal scratch']
  %s0 = inlined_call_operand.vmem [shape: f32[8,4], index: 0, kind: input, shape index: {}]
  %s1 = inlined_call_operand.vmem [shape: f32[2,128], index: 1, kind: input, shape index: {}]
  %s2 = inlined_call_operand.hbm [shape: f32[8,128], index: 2, kind: output, shape index: {}]
  %s3 = sld [smem:[#allocation0]]
  $region18: #{tpu_custom_call.1} parent=0
    _
  %s5 = ssub.s32 1, %s3
  %s6 = scalar_select 0, %s5, %s3
  $region1: #{tpu_custom_call.1} parent=0
    #allocation2 [shape = 'u8[4096]{0}', space=vmem, size = 0x1000, scoped, tag = 'output window, operand 0, single buffered']
    #allocation3 [shape = 's32[1]{0}', space=sflag, size = 0x4, scoped, tag = 'scoped memory for tpu_custom_call.1']
    %7 = vsyncpa [#allocation3], 0
    // Predicated region
    $region2: #{tpu_custom_call.1} parent=1 // pred_check
      _
    $region3: #{tpu_custom_call.1} parent=1 // pred_check_branch
      %9 = sbr.rel (0) target = $region5
    $region4: #{tpu_custom_call.1} parent=1 // pred_region
      _
    $region5: #{tpu_custom_call.1} parent=1 // pred_fallthru
      _
    // Predicated region
    $region6: #{tpu_custom_call.1} parent=1 // pred_check
      _
    $region7: #{tpu_custom_call.1} parent=1 // pred_check_branch
      %11 = sbr.rel (0) target = $region9
    $region8: #{tpu_custom_call.1} parent=1 // pred_region
      _
    $region9: #{tpu_custom_call.1} parent=1 // pred_fallthru
      _
    %v12 = vld [vmem:[%s0] sm:$0xff]
    %v13 = vld [vmem:[%s1] sm:$0x3]
    %15 = vset.pattern.permute.xlu0 0
    %16 = vperm.xlu0 %15, %v12
    %v17 = vpop.permute.xlu0 %16
    %19 = vset.pattern.permute.xlu0 1
    %20 = vperm.xlu0 %19, %v12
    %v21 = vpop.permute.xlu0 %20
    %23 = vset.pattern.permute.xlu0 2
    %24 = vperm.xlu0 %23, %v12
    %v25 = vpop.permute.xlu0 %24
    %27 = vset.pattern.permute.xlu0 3
    %28 = vperm.xlu0 %27, %v12
    %v29 = vpop.permute.xlu0 %28
    %vm31 = vcmask 261120
    %v32 = vsel %vm31, %v17, %v21
    %vm33 = vcmask 523264
    %v34 = vsel %vm33, %v32, %v25
    %vm35 = vcmask 785408
    %v36 = vsel %vm35, %v34, %v29
    %v37 = vlaneseq
    %v38 = vshrl.u32 %v37, 7
    %v39 = vsub.s32 0, %v38
    %v40 = vrot.slane %v13, %v39
    %v41 = vmul.f32 %v36, %v40
    %v42 = vlaneseq
    %v43 = vshrl.u32 %v42, 7
    %v44 = vsub.s32 1, %v43
    %v45 = vrot.slane %v13, %v44
    %v46 = vadd.f32 %v41, %v45
    %v47 = vand.u32 2147483647, %v46
    %vm48 = vcmp.le.f32.partialorder %v47, 0.7853982
    %vm49 = vcmp.lt.s32.totalorder %v46, 0
    %v50 = vand.u32 %v46, 2139095040
    %v51 = vshrl.u32 %v50, 23
    %v52 = vsub.s32 %v51, 127
    %v53 = vand.u32 2147483647, %v46
    %v54 = vand.u32 %v53, 8388607
    %v55 = vor.u32 %v54, 8388608
    %v56 = vsub.s32 0, %v55
    %v57 = vadd.s32 %v52, 1
    %vm58 = vcmp.gt.s32.totalorder %v57, 0
    %v59 = vsel %vm58, %v57, 0
    %v60 = vshrl.u32 %v59, 5
    %v61 = vand.u32 %v59, 31
    %v62 = vsub.s32 32, %v61
    %v63 = vshrl.u32 683565275, %v62
    %v64 = vshll.u32 683565275, %v61
    %v65 = vshrl.u32 2475754826, %v62
    %v66 = vor.u32 %v64, %v65
    %v67 = vshll.u32 2475754826, %v61
    %v68 = vshrl.u32 2131351028, %v62
    %v69 = vor.u32 %v67, %v68
    %v70 = vshll.u32 2131351028, %v61
    %v71 = vshrl.u32 2102212464, %v62
    %v72 = vor.u32 %v70, %v71
    %v73 = vshll.u32 2102212464, %v61
    %v74 = vshrl.u32 920167782, %v62
    %v75 = vor.u32 %v73, %v74
    %v76 = vshll.u32 920167782, %v61
    %v77 = vshrl.u32 1326507024, %v62
    %v78 = vor.u32 %v76, %v77
    %vm79 = vcmp.lt.s32.totalorder %v60, 1
    %vm80 = vcmp.lt.s32.totalorder %v60, 2
    %vm81 = vcmp.lt.s32.totalorder %v60, 3
    %vm82 = vcmp.lt.s32.totalorder %v60, 4
    %v83 = vsel %vm79, %v63, %v66
    %v84 = vsel %vm82, %v72, 2102212464
    %v85 = vsel %vm81, %v69, %v84
    %v86 = vsel %vm80, %v83, %v85
    %v87 = vsel %vm79, %v66, %v69
    %v88 = vsel %vm82, %v75, 920167782
    %v89 = vsel %vm81, %v72, %v88
    %v90 = vsel %vm80, %v87, %v89
    %v91 = vsel %vm79, %v69, %v72
    %v92 = vsel %vm82, %v78, 1326507024
    %v93 = vsel %vm81, %v75, %v92
    %v94 = vsel %vm80, %v91, %v93
    %v95 = vshll.u32 %v55, 8
    %v96 = vmul.u32.u64.compose %v95, %v94
    %v97 = vextract.low.u32 %v96
    %v98 = vextract.high.u32 %v96
    %v99 = vmul.u32.u64.compose %v95, %v90
    %v100 = vextract.low.u32 %v99
    %v101 = vextract.high.u32 %v99
    %v102 = vmul.u32 %v95, %v86
    %v103 = vadd.s32 %v98, %v100
    %vm104 = vc.u32 %v98, %v100
    %v105 = vadd.s32 %v101, 1
    %v106 = vsel %vm104, %v105, %v101
    %v107 = vadd.s32 %v102, %v106
    %v108 = vadd.s32 %v107, 536870912
    %v109 = vshrl.u32 %v108, 30
    %v110 = vshll.u32 %v109, 30
    %v111 = vsub.s32 %v107, %v110
    %vm112 = vcmp.lt.s32.totalorder %v111, 0
    %v113 = vsub.s32 0, %v111
    %v114 = vsel %vm112, %v113, %v111
    %v115 = vclz %v114
    %v116 = vsub.s32 %v115, 2
    %vm117 = vcmp.gt.s32.totalorder 0, %v116
    %v118 = vsel %vm117, 0, %v116
    %v119 = vsub.s32 32, %v118
    %v120 = vshll.u32 %v111, %v118
    %v121 = vshrl.u32 %v103, %v119
    %v122 = vor.u32 %v120, %v121
    %v123 = vsub.s32 4294967266, %v118
    %v124 = vadd.s32 %v123, 127
    %v125 = vshll.u32 %v124, 23
    %v126 = vor.u32 4788187, %v125
    %v127 = vand.u32 2147483647, %v126
    %v129 = vcvt.s32.f32 %v122
    %v130 = vmul.f32 %v129, %v127
    %v131 = vxor.u32 %v130, 2147483648
    %v132 = vsel %vm49, %v131, %v130
    %v133 = vsub.s32 4, %v109
    %v134 = vsel %vm49, %v133, %v109
    %v135 = vsel %vm48, %v46, %v132
    %v136 = vsel %vm48, 0, %v134
    %v137 = vcosq.f32.pop %v135
    %v138 = vsinq.f32.pop %v135
    %vm139 = vweird.f32 %v46
    %v140 = vadd.s32 %v136, 3
    %v141 = vand.u32 %v140, 3
    %vm142 = vcmp.lt.s32.totalorder %v141, 2
    %vm143 = vcmp.eq.s32.totalorder %v141, 0
    %v144 = vxor.u32 %v138, 2147483648
    %v145 = vsel %vm143, %v137, %v144
    %vm146 = vcmp.eq.s32.totalorder %v141, 2
    %v147 = vxor.u32 %v137, 2147483648
    %v148 = vsel %vm146, %v147, %v138
    %v149 = vsel %vm142, %v145, %v148
    %v150 = vsel %vm139, nan, %v149
    %151 = vst [vmem:[#allocation2] sm:$0xff] %v150
    // Predicated region
    $region10: #{tpu_custom_call.1} parent=1 // pred_check
      _
    $region11: #{tpu_custom_call.1} parent=1 // pred_check_branch
      %153 = sbr.rel (0) target = $region13
    $region12: #{tpu_custom_call.1} parent=1 // pred_region
      %s155 = ssub.s32 128, 128
      %156 = vsyncadd [#allocation3], %s155
      %s158 = sshll.u32 [#allocation2], 4
      %s159 = int_to_ptr.vmem [resolvable:$true] %s158
      %161 = dma.vmem_to_hbm [thread:$0]  %s159, 128, %s2, [#allocation3]
    $region13: #{tpu_custom_call.1} parent=1 // pred_fallthru
      _
    // Predicated region
    $region14: #{tpu_custom_call.1} parent=1 // pred_check
      _
    $region15: #{tpu_custom_call.1} parent=1 // pred_check_branch
      %163 = sbr.rel (0) target = $region17
    $region16: #{tpu_custom_call.1} parent=1 // pred_region
      %164 = dma.done [#allocation3], 128
    $region17: #{tpu_custom_call.1} parent=1 // pred_fallthru
      _
    %165 = vsyncpa [#allocation3], 1

</llo_original>
